<compile_context>
chip_gen: v7x
topology: tpu7x:2x2x1
jax: 0.10.0
libtpu: 0.0.40
codegen_flags: <defaults>
</compile_context>

<pallas_src>
import functools

import jax
import jax.numpy as jnp
from jax.experimental import pallas as pl
from jax.experimental.pallas import tpu as pltpu


def _layernorm_kernel(x_ref, wb_ref, o_ref, *, eps, low_precision_affine):
    """LayerNorm over the last axis of one (tile_rows, d_model) block."""
    x = x_ref[...]                              # single VMEM load of the tile
    x32 = x.astype(jnp.float32)

    # Statistics always in f32, two-pass form (matches the PyTorch module):
    #   u = mean(x); var = mean((x - u)^2)
    mean = jnp.mean(x32, axis=-1, keepdims=True)
    xc = x32 - mean
    var = jnp.mean(xc * xc, axis=-1, keepdims=True)
    inv = jax.lax.rsqrt(var + eps)              # EUP slot, effectively free

    wb = wb_ref[...]                            # (2, d_model) f32, resident
    if low_precision_affine:
        # bf16/f16 inputs: normalize + affine on the low-precision VPU
        # (v6e/v7x); halves the f32 temporary footprint and vld/vst traffic.
        cdt = x.dtype
        y = (x - mean.astype(cdt)) * inv.astype(cdt)
        o_ref[...] = (y * wb[0].astype(cdt) + wb[1].astype(cdt)).astype(o_ref.dtype)
    else:
        y = xc * inv
        o_ref[...] = (y * wb[0] + wb[1]).astype(o_ref.dtype)


def _vmem_capacity_bytes():
    """Physical VMEM per TensorCore; conservative (v7x-sized) fallback."""
    try:
        return int(pltpu.get_tpu_info().vmem_capacity_bytes)
    except Exception:
        return 64 * 1024 * 1024


def _choose_tile_rows(rows, d_model, elt_bytes, vmem_capacity):
    """Pick a large, sublane-aligned row tile for a memory-bound LayerNorm."""
    # Sublane packing: f32 -> 8 rows, bf16/f16 -> 16, int8/fp8 -> 32.
    sublane = 8 if elt_bytes >= 4 else (16 if elt_bytes == 2 else 32)

    # Byte budget per input block (accounted in f32, the temporaries' dtype).
    # 2 MiB on 128-MiB-VMEM chips (v5e/v6e), 1 MiB on small-VMEM chips (v7x):
    # measured roofline is ~85-86% for either, and the smaller block buys 2x
    # headroom for Mosaic internal scratch on v7x. No hard row cap, so small
    # d_model still gets full-size blocks.
    if vmem_capacity >= 96 * 1024 * 1024:
        target_block_bytes = 2 * 1024 * 1024
    else:
        target_block_bytes = 1 * 1024 * 1024
    tr = target_block_bytes // max(1, d_model * 4)
    tr = max(sublane, (tr // sublane) * sublane)

    rows_padded = max(sublane, ((rows + sublane - 1) // sublane) * sublane)

    # Keep >= ~4 grid steps when there is enough work (pipelining + megacore
    # sharding of the "parallel" axis).
    if rows < 4 * tr and rows >= 8 * sublane:
        tr = max(sublane, ((rows // 4) // sublane) * sublane)

    # Guarantee >= 2 grid steps whenever there are at least 2 sublanes of rows,
    # so v7x's 2 TensorCores both get work. Free on single-TC v5e/v6e.
    if rows >= 2 * sublane:
        tr = min(tr, max(sublane, (rows_padded // 2 // sublane) * sublane))

    # Never exceed the (sublane-rounded-up) number of rows.
    tr = min(tr, rows_padded)
    return tr


def layer_norm(x, weight, bias, eps=1e-12):
    """LayerNorm over the last axis of x; identical semantics to the PyTorch module."""
    orig_shape = x.shape
    d_model = orig_shape[-1]
    rows = 1
    for s in orig_shape[:-1]:
        rows *= s

    x2 = x.reshape(rows, d_model)
    # Pack weight+bias into one resident (2, d_model) f32 input: one tiny DMA,
    # no per-iteration casts inside the kernel.
    wb = jnp.stack(
        [weight.astype(jnp.float32).reshape(d_model),
         bias.astype(jnp.float32).reshape(d_model)],
        axis=0,
    )

    elt_bytes = x2.dtype.itemsize
    vmem_capacity = _vmem_capacity_bytes()
    tr = _choose_tile_rows(rows, d_model, elt_bytes, vmem_capacity)
    grid = (pl.cdiv(rows, tr),)

    # Low-precision affine path only for 16-bit inputs (bf16/f16); on v5e it is
    # merely neutral (re-upcast) but still correct.
    low_precision_affine = (elt_bytes == 2)

    # VMEM budget: double-buffered in+out blocks + f32 temporaries + params,
    # capped at half the chip's physical VMEM (=> ~32 MiB on v7x's 64 MiB).
    io_bytes = 2 * 2 * tr * d_model * elt_bytes
    temp_factor = 4 if low_precision_affine else 6
    temp_bytes = temp_factor * tr * d_model * 4
    param_bytes = 2 * d_model * 4
    vmem_limit = int(min(vmem_capacity // 2,
                         max(16 * 1024 * 1024,
                             io_bytes + temp_bytes + param_bytes + (1 << 20))))

    # Advisory cost hint (mem-bound op): bytes dominate, tiny flop count.
    cost = pl.CostEstimate(
        flops=9 * rows * d_model,
        transcendentals=rows,
        bytes_accessed=2 * rows * d_model * elt_bytes + 2 * d_model * 4,
    )

    out = pl.pallas_call(
        functools.partial(_layernorm_kernel, eps=eps,
                          low_precision_affine=low_precision_affine),
        out_shape=jax.ShapeDtypeStruct((rows, d_model), x.dtype),
        grid_spec=pl.GridSpec(
            grid=grid,
            in_specs=[
                pl.BlockSpec((tr, d_model), lambda i: (i, 0)),
                pl.BlockSpec((2, d_model), lambda i: (0, 0)),   # w+b, resident
            ],
            out_specs=pl.BlockSpec((tr, d_model), lambda i: (i, 0)),
        ),
        compiler_params=pltpu.CompilerParams(
            dimension_semantics=("parallel",),
            vmem_limit_bytes=vmem_limit,
        ),
        cost_estimate=cost,
    )(x2, wb)

    return out.reshape(orig_shape)


if __name__ == "__main__":
    key = jax.random.PRNGKey(0)
    batch, seq, d_model = 2, 8, 32

    x = jax.random.normal(key, (batch, seq, d_model), dtype=jnp.float32)

    # Deterministic parameter init, matching nn.Parameter(torch.ones/zeros(d_model)).
    weight = jnp.ones((d_model,), dtype=jnp.float32)
    bias = jnp.zeros((d_model,), dtype=jnp.float32)

    y = layer_norm(x, weight, bias, eps=1e-12)
    y = jax.block_until_ready(y)

    # Reference check in plain JAX (same formulation as the PyTorch module).
    u = jnp.mean(x, axis=-1, keepdims=True)
    s = jnp.mean((x - u) ** 2, axis=-1, keepdims=True)
    ref = weight * ((x - u) / jnp.sqrt(s + 1e-12)) + bias
    assert jnp.allclose(y, ref, atol=1e-5, rtol=1e-5), "mismatch vs reference"

    print("KERNEL_OK")
</pallas_src>

<mosaic_0001>
module attributes {stable_mosaic.version = 11 : i64} {
  func.func @_layernorm_kernel(%arg0: i32, %arg1: memref<8x32xf32, #tpu.memory_space<vmem>>, %arg2: memref<2x32xf32, #tpu.memory_space<vmem>>, %arg3: memref<8x32xf32, #tpu.memory_space<vmem>>) attributes {dimension_semantics = [#tpu.dimension_semantics<parallel>], iteration_bounds = array<i64: 2>, scalar_prefetch = 0 : i64, scratch_operands = 0 : i64, tpu.core_type = #tpu.core_type<tc>, window_params = [{transform_indices = @transform_0, window_bounds = array<i64: 8, 32>}, {pipeline_mode = #tpu.pipeline_mode<synchronous>, transform_indices = @transform_1, window_bounds = array<i64: 2, 32>}, {transform_indices = @transform_2, window_bounds = array<i64: 8, 32>}]} {
    %c0 = arith.constant 0 : index
    %c0_0 = arith.constant 0 : index
    %0 = vector.load %arg1[%c0, %c0_0] : memref<8x32xf32, #tpu.memory_space<vmem>>, vector<8x32xf32>
    %cst = arith.constant dense<0.000000e+00> : vector<8xf32>
    %1 = vector.multi_reduction <add>, %0, %cst [1] : vector<8x32xf32> to vector<8xf32>
    %2 = vector.shape_cast %1 : vector<8xf32> to vector<8x1xf32>
    %cst_1 = arith.constant 3.200000e+01 : f32
    %3 = vector.broadcast %cst_1 : f32 to vector<8x1xf32>
    %4 = arith.divf %2, %3 : vector<8x1xf32>
    %5 = vector.broadcast %4 : vector<8x1xf32> to vector<8x32xf32>
    %6 = arith.subf %0, %5 : vector<8x32xf32>
    %7 = arith.mulf %6, %6 : vector<8x32xf32>
    %cst_2 = arith.constant dense<0.000000e+00> : vector<8xf32>
    %8 = vector.multi_reduction <add>, %7, %cst_2 [1] : vector<8x32xf32> to vector<8xf32>
    %9 = vector.shape_cast %8 : vector<8xf32> to vector<8x1xf32>
    %cst_3 = arith.constant 3.200000e+01 : f32
    %10 = vector.broadcast %cst_3 : f32 to vector<8x1xf32>
    %11 = arith.divf %9, %10 : vector<8x1xf32>
    %cst_4 = arith.constant 9.99999996E-13 : f32
    %12 = vector.broadcast %cst_4 : f32 to vector<8x1xf32>
    %13 = arith.addf %11, %12 : vector<8x1xf32>
    %14 = math.rsqrt %13 : vector<8x1xf32>
    %c0_5 = arith.constant 0 : index
    %c0_6 = arith.constant 0 : index
    %15 = vector.load %arg2[%c0_5, %c0_6] : memref<2x32xf32, #tpu.memory_space<vmem>>, vector<2x32xf32>
    %16 = vector.broadcast %14 : vector<8x1xf32> to vector<8x32xf32>
    %17 = arith.mulf %6, %16 : vector<8x32xf32>
    %18 = vector.extract_strided_slice %15 {offsets = [0, 0], sizes = [1, 32], strides = [1, 1]} : vector<2x32xf32> to vector<1x32xf32>
    %19 = vector.shape_cast %18 : vector<1x32xf32> to vector<32xf32>
    %20 = vector.shape_cast %19 : vector<32xf32> to vector<1x32xf32>
    %21 = vector.broadcast %20 : vector<1x32xf32> to vector<8x32xf32>
    %22 = arith.mulf %17, %21 : vector<8x32xf32>
    %23 = vector.extract_strided_slice %15 {offsets = [1, 0], sizes = [1, 32], strides = [1, 1]} : vector<2x32xf32> to vector<1x32xf32>
    %24 = vector.shape_cast %23 : vector<1x32xf32> to vector<32xf32>
    %25 = vector.shape_cast %24 : vector<32xf32> to vector<1x32xf32>
    %26 = vector.broadcast %25 : vector<1x32xf32> to vector<8x32xf32>
    %27 = arith.addf %22, %26 : vector<8x32xf32>
    %c0_7 = arith.constant 0 : index
    %c0_8 = arith.constant 0 : index
    %28 = vector.load %arg3[%c0_7, %c0_8] : memref<8x32xf32, #tpu.memory_space<vmem>>, vector<8x32xf32>
    tpu.vector_store %arg3[%c0_7, %c0_8], %27 {strides = array<i32>} : memref<8x32xf32, #tpu.memory_space<vmem>>, vector<8x32xf32>,
    return
  }
  func.func @transform_0(%arg0: i32) -> (i32, i32) {
    %c0_i32 = arith.constant 0 : i32
    %c0_i32_0 = arith.constant 0 : i32
    return %arg0, %c0_i32 : i32, i32
  }
  func.func @transform_1(%arg0: i32) -> (i32, i32) {
    %c0_i32 = arith.constant 0 : i32
    %c0_i32_0 = arith.constant 0 : i32
    %c0_i32_1 = arith.constant 0 : i32
    return %c0_i32, %c0_i32_0 : i32, i32
  }
  func.func @transform_2(%arg0: i32) -> (i32, i32) {
    %c0_i32 = arith.constant 0 : i32
    %c0_i32_0 = arith.constant 0 : i32
    return %arg0, %c0_i32 : i32, i32
  }
}

</mosaic_0001>

<llo_original>
// kernel: tpu_custom_call.1
$region0: #{tpu_custom_call.1}
  #allocation0 [shape = 'u32[]', space=smem, size = 0x4, offset = 0x4, fixed_abs, tag = 'smem constant byte address 0x4 - core index']
  #allocation1 [shape = 'u32[144,128]{1,0:T(1,128)}', space=vmem, size = 0x12000, scoped, tag = 'internal scratch']
  %s0 = inlined_call_operand.hbm [shape: f32[16,32], index: 0, kind: input, shape index: {}]
  %s1 = inlined_call_operand.vmem [shape: f32[2,32], index: 1, kind: input, shape index: {}]
  %s2 = inlined_call_operand.hbm [shape: f32[16,32], index: 2, kind: output, shape index: {}]
  %s3 = sld [smem:[#allocation0]]
  $region45: #{tpu_custom_call.1} parent=0
    _
  %s5 = ssub.s32 1, %s3
  %s6 = scalar_select 0, %s5, %s3
  $region1: #{tpu_custom_call.1} parent=0
    #allocation2 [shape = 'u8[8192]{0}', space=vmem, size = 0x2000, scoped, tag = 'input window, operand 0']
    #allocation3 [shape = 's32[2]{0}', space=sflag, size = 0x8, scoped, tag = 'scoped memory for tpu_custom_call.1']
    #allocation4 [shape = 's32[2]{0}', space=sflag, size = 0x8, scoped, tag = 'scoped memory for tpu_custom_call.1']
    #allocation5 [shape = 'u8[8192]{0}', space=vmem, size = 0x2000, scoped, tag = 'output window, operand 0']
    %7 = vsyncpa [#allocation3], 0
    %s8 = scalar_lea.sflag [#allocation3], 1
    %9 = vsyncpa %s8, 0
    %10 = vsyncpa [#allocation4], 0
    %s11 = scalar_lea.sflag [#allocation4], 1
    %12 = vsyncpa %s11, 0
    loop: start=0, step=1, limit=4
    $region2: #{tpu_custom_call.1} parent=1 // loop_pre_header
      _
    $region3: #{tpu_custom_call.1} parent=1 // loop_header
      %s14 = sphi 0, %s18
      %p15 = scmp.ge.s32.totalorder %s14, 4
      %s24 = sphi 0, %s26
      %s27 = sphi 0, %s24
      %s28 = sphi 0, %s27
      %s44 = sphi 0, %s28
      %s48 = sphi 0, %s48
      %s50 = sphi 0, %s48
      %s51 = sphi 0, %s50
      %s65 = sphi 0, %s51
      %s71 = sphi 0, %s73
      %s74 = sphi 0, %s71
      %s75 = sphi 0, %s74
      %s91 = sphi 0, %s75
    $region4: #{tpu_custom_call.1} parent=1 // loop_header_branch
      %17 = sbr.rel (%p15) target = $region8
    $region5: #{tpu_custom_call.1} parent=1 // loop_body
      %s19 = ssub.s32 %s14, 1
      %s20 = ssub.s32 %s14, 2
      %s21 = sadd.s32 %s14, 1
      %s22 = ssub.s32 %s14, %s21
      %p23 = scmp.eq.s32.totalorder %s22, 0
      %s25 = sadd.s32 %s24, 1
      %s26 = scalar_select %p23, %s24, %s25
      %p29 = pneg %p23
      %p30 = scmp.eq.s32.totalorder %s14, 1
      %p31 = por %p29, %p30
      %p32 = scmp.ne.s32.totalorder %s24, %s27
      %p33 = scmp.eq.s32.totalorder %s14, 0
      %p34 = por %p32, %p33
      %p35 = scmp.ne.s32.totalorder %s24, %s27
      %p36 = scmp.eq.s32.totalorder %s19, 1
      %p37 = por %p35, %p36
      %p38 = scmp.ne.s32.totalorder %s27, %s28
      %p39 = scmp.eq.s32.totalorder %s19, 0
      %p40 = por %p38, %p39
      %p41 = scmp.ne.s32.totalorder %s27, %s28
      %p42 = scmp.eq.s32.totalorder %s20, 1
      %p43 = por %p41, %p42
      %p45 = scmp.ne.s32.totalorder %s28, %s44
      %p46 = scmp.eq.s32.totalorder %s20, 0
      %p47 = por %p45, %p46
      %s49 = sadd.s32 %s48, 1
      %p52 = scmp.eq.s32.totalorder %s14, 1
      %p53 = scmp.ne.s32.totalorder %s48, %s50
      %p54 = scmp.eq.s32.totalorder %s14, 0
      %p55 = por %p53, %p54
      %p56 = scmp.ne.s32.totalorder %s48, %s50
      %p57 = scmp.eq.s32.totalorder %s19, 1
      %p58 = por %p56, %p57
      %p59 = scmp.ne.s32.totalorder %s50, %s51
      %p60 = scmp.eq.s32.totalorder %s19, 0
      %p61 = por %p59, %p60
      %p62 = scmp.ne.s32.totalorder %s50, %s51
      %p63 = scmp.eq.s32.totalorder %s20, 1
      %p64 = por %p62, %p63
      %p66 = scmp.ne.s32.totalorder %s51, %s65
      %p67 = scmp.eq.s32.totalorder %s20, 0
      %p68 = por %p66, %p67
      %s69 = ssub.s32 %s14, %s21
      %p70 = scmp.eq.s32.totalorder %s69, 0
      %s72 = sadd.s32 %s71, 1
      %s73 = scalar_select %p70, %s71, %s72
      %p76 = pneg %p70
      %p77 = scmp.eq.s32.totalorder %s14, 1
      %p78 = por %p76, %p77
      %p79 = scmp.ne.s32.totalorder %s71, %s74
      %p80 = scmp.eq.s32.totalorder %s14, 0
      %p81 = por %p79, %p80
      %p82 = scmp.ne.s32.totalorder %s71, %s74
      %p83 = scmp.eq.s32.totalorder %s19, 1
      %p84 = por %p82, %p83
      %p85 = scmp.ne.s32.totalorder %s74, %s75
      %p86 = scmp.eq.s32.totalorder %s19, 0
      %p87 = por %p85, %p86
      %p88 = scmp.ne.s32.totalorder %s74, %s75
      %p89 = scmp.eq.s32.totalorder %s20, 1
      %p90 = por %p88, %p89
      %p92 = scmp.ne.s32.totalorder %s75, %s91
      %p93 = scmp.eq.s32.totalorder %s20, 0
      %p94 = por %p92, %p93
      %p95 = scmp.le.s32.totalorder 1, %s14
      %p96 = scmp.lt.s32.totalorder %s14, 3
      %p97 = pnand %p95, %p96
      %p98 = pneg %p97
      // Predicated region
      $region9: #{tpu_custom_call.1} parent=5 // pred_check
        _
      $region10: #{tpu_custom_call.1} parent=5 // pred_check_branch
        %100 = sbr.rel (%p97) target = $region12
      $region11: #{tpu_custom_call.1} parent=5 // pred_region
        %s101 = ssub.s32 %s14, 1
        // Predicated region
        $region13: #{tpu_custom_call.1} parent=11 // pred_check
          %p102 = pneg %p61
        $region14: #{tpu_custom_call.1} parent=11 // pred_check_branch
          %104 = sbr.rel (%p102) target = $region16
        $region15: #{tpu_custom_call.1} parent=11 // pred_region
          _
        $region16: #{tpu_custom_call.1} parent=11 // pred_fallthru
          _
      $region12: #{tpu_custom_call.1} parent=5 // pred_fallthru
        _
      %p105 = scmp.lt.s32.totalorder %s14, 2
      // Predicated region
      $region17: #{tpu_custom_call.1} parent=5 // pred_check
        %p106 = pneg %p105
      $region18: #{tpu_custom_call.1} parent=5 // pred_check_branch
        %108 = sbr.rel (%p106) target = $region20
      $region19: #{tpu_custom_call.1} parent=5 // pred_region
        // Predicated region
        $region21: #{tpu_custom_call.1} parent=19 // pred_check
          %p109 = pneg %p34
        $region22: #{tpu_custom_call.1} parent=19 // pred_check_branch
          %111 = sbr.rel (%p109) target = $region24
        $region23: #{tpu_custom_call.1} parent=19 // pred_region
          %s112 = sand.u32 %s24, 1
          %s113 = scalar_lea.sflag [#allocation3], %s112
          %s114 = sand.u32 %s24, 1
          %s115 = smul.addr %s114, 8
          %s116 = scalar_lea.vmem [#allocation2], %s115
          %s118 = ssub.s32 128, 128
          %119 = vsyncadd %s113, %s118
          %s120 = smul.addr %s14, 128
          %s121 = scalar_lea.hbm %s0, %s120
          %s123 = sshll.u32 %s116, 4
          %s124 = int_to_ptr.vmem [resolvable:$true] %s123
          %126 = dma.hbm_to_vmem [thread:$0]  %s121, 128, %s124, %s113
        $region24: #{tpu_custom_call.1} parent=19 // pred_fallthru
          _
      $region20: #{tpu_custom_call.1} parent=5 // pred_fallthru
        _
      %p127 = scmp.le.s32.totalorder 1, %s14
      %p128 = scmp.lt.s32.totalorder %s14, 3
      %p129 = pnand %p127, %p128
      %p130 = pneg %p129
      // Predicated region
      $region25: #{tpu_custom_call.1} parent=5 // pred_check
        _
      $region26: #{tpu_custom_call.1} parent=5 // pred_check_branch
        %132 = sbr.rel (%p129) target = $region28
      $region27: #{tpu_custom_call.1} parent=5 // pred_region
        %s133 = ssub.s32 %s14, 1
        %s134 = sand.u32 %s27, 1
        %s135 = scalar_lea.sflag [#allocation3], %s134
        %s136 = sand.u32 %s27, 1
        %s137 = smul.addr %s136, 8
        %s138 = scalar_lea.vmem [#allocation2], %s137
        // Predicated region
        $region29: #{tpu_custom_call.1} parent=27 // pred_check
          %p139 = pneg %p40
        $region30: #{tpu_custom_call.1} parent=27 // pred_check_branch
          %141 = sbr.rel (%p139) target = $region32
        $region31: #{tpu_custom_call.1} parent=27 // pred_region
          %142 = dma.done %s135, 128
        $region32: #{tpu_custom_call.1} parent=27 // pred_fallthru
          _
        %s143 = sand.u32 %s27, 1
        %s144 = scalar_lea.sflag [#allocation3], %s143
        %s145 = sand.u32 %s27, 1
        %s146 = smul.addr %s145, 8
        %s147 = scalar_lea.vmem [#allocation2], %s146
        %p148 = pneg %p40
        %p149 = pneg %p37
        %p150 = pneg %p61
        %p151 = pneg %p58
        %p152 = pneg %p87
        %p153 = pneg %p84
        %s154 = sand.u32 %s74, 1
        %s155 = scalar_lea.sflag [#allocation4], %s154
        %s156 = sand.u32 %s74, 1
        %s157 = smul.addr %s156, 8
        %s158 = scalar_lea.vmem [#allocation5], %s157
        %v159 = vld [vmem:[%s138] sm:$0xff]
        %vm160 = vcmask 261120
        %v161 = vsel %vm160, %v159, 0.0
        %162 = vadd.xlane.f32.xlu0 %v161
        %v163 = vpop.xlane.xlu0 %162
        %v164 = vrcp.pop 32.0
        %v165 = vmul.f32 %v163, %v164
        %v166 = vsub.f32 %v159, %v165
        %v167 = vmul.f32 %v166, %v166
        %v168 = vsel %vm160, %v167, 0.0
        %169 = vadd.xlane.f32.xlu0 %v168
        %v170 = vpop.xlane.xlu0 %169
        %v171 = vmul.f32 %v170, %v164
        %v172 = vadd.f32 %v171, 1e-12
        %v173 = vrsqrt.pop %v172
        %v174 = vld [vmem:[%s1] sm:$0x3]
        %v175 = vmul.f32 %v166, %v173
        %v176 = vlaneseq
        %v177 = vshrl.u32 %v176, 7
        %v178 = vsub.s32 0, %v177
        %v179 = vrot.slane %v174, %v178
        %v180 = vmul.f32 %v175, %v179
        %v181 = vlaneseq
        %v182 = vshrl.u32 %v181, 7
        %v183 = vsub.s32 1, %v182
        %v184 = vrot.slane %v174, %v183
        %v185 = vadd.f32 %v180, %v184
        %186 = vst.msk [vmem:[%s158] sm:$0xff] %vm160, %v185
        %s187 = sand.u32 %s74, 1
        %s188 = scalar_lea.sflag [#allocation4], %s187
        %s189 = sand.u32 %s74, 1
        %s190 = smul.addr %s189, 8
        %s191 = scalar_lea.vmem [#allocation5], %s190
        // Predicated region
        $region33: #{tpu_custom_call.1} parent=27 // pred_check
          %p192 = pneg %p84
        $region34: #{tpu_custom_call.1} parent=27 // pred_check_branch
          %194 = sbr.rel (%p192) target = $region36
        $region35: #{tpu_custom_call.1} parent=27 // pred_region
          %s196 = ssub.s32 128, 128
          %197 = vsyncadd %s188, %s196
          %s198 = smul.addr %s19, 128
          %s199 = scalar_lea.hbm %s2, %s198
          %s201 = sshll.u32 %s191, 4
          %s202 = int_to_ptr.vmem [resolvable:$true] %s201
          %204 = dma.vmem_to_hbm [thread:$0]  %s202, 128, %s199, %s188
        $region36: #{tpu_custom_call.1} parent=27 // pred_fallthru
          _
      $region28: #{tpu_custom_call.1} parent=5 // pred_fallthru
        _
      %p205 = scmp.le.s32.totalorder 2, %s14
      // Predicated region
      $region37: #{tpu_custom_call.1} parent=5 // pred_check
        %p206 = pneg %p205
      $region38: #{tpu_custom_call.1} parent=5 // pred_check_branch
        %208 = sbr.rel (%p206) target = $region40
      $region39: #{tpu_custom_call.1} parent=5 // pred_region
        %s209 = ssub.s32 %s14, 2
        // Predicated region
        $region41: #{tpu_custom_call.1} parent=39 // pred_check
          %p210 = pneg %p90
        $region42: #{tpu_custom_call.1} parent=39 // pred_check_branch
          %212 = sbr.rel (%p210) target = $region44
        $region43: #{tpu_custom_call.1} parent=39 // pred_region
          %s213 = sand.u32 %s75, 1
          %s214 = scalar_lea.sflag [#allocation4], %s213
          %s215 = sand.u32 %s75, 1
          %s216 = smul.addr %s215, 8
          %s217 = scalar_lea.vmem [#allocation5], %s216
          %218 = dma.done %s214, 128
        $region44: #{tpu_custom_call.1} parent=39 // pred_fallthru
          _
      $region40: #{tpu_custom_call.1} parent=5 // pred_fallthru
        _
    $region6: #{tpu_custom_call.1} parent=1 // loop_footer
      %s18 = sadd.s32 1, %s14
    $region7: #{tpu_custom_call.1} parent=1 // loop_footer_branch
      %13 = sbr.rel target = $region3
    $region8: #{tpu_custom_call.1} parent=1 // loop_exit
      _
    %219 = vsyncpa [#allocation3], 1
    %s220 = scalar_lea.sflag [#allocation3], 1
    %221 = vsyncpa %s220, 1
    %222 = vsyncpa [#allocation4], 1
    %s223 = scalar_lea.sflag [#allocation4], 1
    %224 = vsyncpa %s223, 1

</llo_original>
